<compile_context>
chip_gen: v7x
topology: tpu7x:2x2x1
jax: 0.10.0
libtpu: 0.0.40
codegen_flags: <defaults>
</compile_context>

<pallas_src>
import jax
import jax.numpy as jnp
from jax.experimental import pallas as pl
from jax.experimental.pallas import tpu as pltpu

_LANE = 128


def _round_up(x, m):
    return ((x + m - 1) // m) * m


def _vmem_budgets():
    """(x double-buffer budget, vmem_limit_bytes), gated on physical VMEM."""
    try:
        cap = int(pltpu.get_tpu_info().vmem_capacity_bytes)
    except Exception:
        cap = 64 * 1024 * 1024  # conservative: assume v7x-sized VMEM
    if cap >= 100 * 1024 * 1024:          # v5e / v6e: 128 MiB physical
        return 48 * 1024 * 1024, 96 * 1024 * 1024
    return 24 * 1024 * 1024, 48 * 1024 * 1024  # v7x: 64 MiB physical


def _pick_tm(M, H, dtype, x_budget_bytes, tm_cap=4096):
    """Largest 128-multiple row tile whose double-buffered x block fits budget."""
    itemsize = jnp.dtype(dtype).itemsize
    tm = (x_budget_bytes // (2 * H * itemsize)) // _LANE * _LANE
    return int(max(_LANE, min(tm, tm_cap)))


def _mrc_head_kernel(x_ref, w_ref, b_ref, o_ref):
    # x_ref: (tm, H)  w_ref: (2, H)  b_ref: (2, 1) f32  o_ref: (2, tm)
    # w . x^T via rhs-transposed dot_general (no materialized x transpose).
    acc = jax.lax.dot_general(
        w_ref[...], x_ref[...],
        dimension_numbers=(((1,), (1,)), ((), ())),
        preferred_element_type=jnp.float32,
    )                                      # (2, tm) f32
    o_ref[...] = (acc + b_ref[...]).astype(o_ref.dtype)


def mrc_finetune_forward(input_tensor, w_start, b_start, w_end, b_end, *, tm=None):
    """Pallas implementation of MRC_finetune.forward.

    input_tensor: [B, S, H]
    w_start, w_end: [1, H]   (PyTorch Linear weight layout: [out, in])
    b_start, b_end: [1]
    returns (start_logits [B, S, 1], end_logits [B, S, 1])
    """
    B, S, H = input_tensor.shape
    M = B * S
    dtype = input_tensor.dtype
    itemsize = jnp.dtype(dtype).itemsize

    x_budget, vmem_limit = _vmem_budgets()
    if tm is None:
        tm = _pick_tm(M, H, dtype, x_budget)
    else:
        tm = max(_LANE, (int(tm) // _LANE) * _LANE)

    if tm >= M:
        # Single block: full-extent dims (no 128-divisibility requirement).
        tm = M
    else:
        # Keep blocks no larger than the array (tm stays a 128-multiple) and
        # bias toward an even number of grid steps for v7x core balance.
        tm = min(tm, (M // _LANE) * _LANE)
        grid_m = pl.cdiv(M, tm)
        if grid_m > 1 and grid_m % 2 == 1:
            tm = min(tm, _round_up(pl.cdiv(M, grid_m + 1), _LANE))
    grid_m = pl.cdiv(M, tm)
    M_pad = grid_m * tm

    x2d = input_tensor.reshape(M, H)
    # Fused (2, H) weight (sublane-padded only) + tiny (2, 1) f32 bias.
    w = jnp.concatenate([w_start, w_end], axis=0).astype(dtype)           # (2, H)
    b = jnp.concatenate([b_start, b_end]).reshape(2, 1).astype(jnp.float32)

    cost = pl.CostEstimate(
        flops=4 * M * H,
        transcendentals=0,
        bytes_accessed=M * H * itemsize + 2 * M_pad * itemsize + 2 * H * itemsize + 8,
    )

    out = pl.pallas_call(
        _mrc_head_kernel,
        out_shape=jax.ShapeDtypeStruct((2, M_pad), dtype),
        grid_spec=pltpu.PrefetchScalarGridSpec(
            num_scalar_prefetch=0,
            grid=(grid_m,),
            in_specs=[
                pl.BlockSpec((tm, H), lambda i: (i, 0)),   # streamed x tile
                pl.BlockSpec((2, H), lambda i: (0, 0)),    # resident fused weight
                pl.BlockSpec((2, 1), lambda i: (0, 0)),    # fused bias
            ],
            out_specs=pl.BlockSpec((2, tm), lambda i: (0, i)),  # lane-dense output
        ),
        compiler_params=pltpu.CompilerParams(
            dimension_semantics=("parallel",),
            vmem_limit_bytes=vmem_limit,
        ),
        cost_estimate=cost,
    )(x2d, w, b)

    if M_pad != M:
        out = out[:, :M]
    start_logits = out[0].reshape(B, S, 1)
    end_logits = out[1].reshape(B, S, 1)
    return start_logits, end_logits


def _reference(x, w_start, b_start, w_end, b_end):
    return x @ w_start.T + b_start, x @ w_end.T + b_end


def _make_inputs(key, B, S, H):
    kx, kws, kbs, kwe, kbe = jax.random.split(key, 5)
    bound = 1.0 / (H ** 0.5)
    x = jax.random.normal(kx, (B, S, H), dtype=jnp.float32)
    w_start = jax.random.uniform(kws, (1, H), minval=-bound, maxval=bound, dtype=jnp.float32)
    b_start = jax.random.uniform(kbs, (1,), minval=-bound, maxval=bound, dtype=jnp.float32)
    w_end = jax.random.uniform(kwe, (1, H), minval=-bound, maxval=bound, dtype=jnp.float32)
    b_end = jax.random.uniform(kbe, (1,), minval=-bound, maxval=bound, dtype=jnp.float32)
    return x, w_start, b_start, w_end, b_end


if __name__ == "__main__":
    key = jax.random.PRNGKey(0)
    k1, k2, k3 = jax.random.split(key, 3)

    # --- Test 1: small shapes consistent with the module (batch=2, seq=8, hidden=32).
    x, ws, bs, we, be = _make_inputs(k1, 2, 8, 32)
    s_log, e_log = mrc_finetune_forward(x, ws, bs, we, be)
    jax.block_until_ready((s_log, e_log))
    rs, re = _reference(x, ws, bs, we, be)
    assert s_log.shape == (2, 8, 1) and e_log.shape == (2, 8, 1)
    assert jnp.allclose(s_log, rs, atol=1e-5)
    assert jnp.allclose(e_log, re, atol=1e-5)

    # --- Test 2: ragged M (single-block full-extent path, M not 128-aligned).
    x2, ws2, bs2, we2, be2 = _make_inputs(k2, 2, 300, 128)
    s2, e2 = mrc_finetune_forward(x2, ws2, bs2, we2, be2)
    jax.block_until_ready((s2, e2))
    rs2, re2 = _reference(x2, ws2, bs2, we2, be2)
    assert jnp.allclose(s2, rs2, atol=1e-4)
    assert jnp.allclose(e2, re2, atol=1e-4)

    # --- Test 3: forced small tile exercises the multi-step grid path with a
    # ragged tail (OOB input rows + padded lane-dense output columns).
    x3, ws3, bs3, we3, be3 = _make_inputs(k3, 2, 330, 256)   # M = 660, tm = 128
    s3, e3 = mrc_finetune_forward(x3, ws3, bs3, we3, be3, tm=128)
    jax.block_until_ready((s3, e3))
    rs3, re3 = _reference(x3, ws3, bs3, we3, be3)
    assert jnp.allclose(s3, rs3, atol=1e-4)
    assert jnp.allclose(e3, re3, atol=1e-4)

    print("KERNEL_OK")
</pallas_src>

<mosaic_0001>
module attributes {stable_mosaic.version = 11 : i64} {
  func.func @_mrc_head_kernel(%arg0: i32, %arg1: memref<16x32xf32, #tpu.memory_space<vmem>>, %arg2: memref<2x32xf32, #tpu.memory_space<vmem>>, %arg3: memref<2x1xf32, #tpu.memory_space<vmem>>, %arg4: memref<2x16xf32, #tpu.memory_space<vmem>>) attributes {dimension_semantics = [#tpu.dimension_semantics<parallel>], iteration_bounds = array<i64: 1>, scalar_prefetch = 0 : i64, scratch_operands = 0 : i64, tpu.core_type = #tpu.core_type<tc>, window_params = [{transform_indices = @transform_0, window_bounds = array<i64: 16, 32>}, {pipeline_mode = #tpu.pipeline_mode<synchronous>, transform_indices = @transform_1, window_bounds = array<i64: 2, 32>}, {pipeline_mode = #tpu.pipeline_mode<synchronous>, transform_indices = @transform_2, window_bounds = array<i64: 2, 1>}, {transform_indices = @transform_3, window_bounds = array<i64: 2, 16>}]} {
    %c0 = arith.constant 0 : index
    %c0_0 = arith.constant 0 : index
    %0 = vector.load %arg2[%c0, %c0_0] : memref<2x32xf32, #tpu.memory_space<vmem>>, vector<2x32xf32>
    %c0_1 = arith.constant 0 : index
    %c0_2 = arith.constant 0 : index
    %1 = vector.load %arg1[%c0_1, %c0_2] : memref<16x32xf32, #tpu.memory_space<vmem>>, vector<16x32xf32>
    %cst = arith.constant dense<0.000000e+00> : vector<2x16xf32>
    %2 = tpu.matmul %0, %1, %cst {dimension_numbers = #tpu.dot_dimension_numbers<[1], [1], [0], [0], [0, 0, 1, 0], [], []>} : vector<2x32xf32>, vector<16x32xf32>, vector<2x16xf32> -> vector<2x16xf32>
    %c0_3 = arith.constant 0 : index
    %c0_4 = arith.constant 0 : index
    %3 = vector.load %arg3[%c0_3, %c0_4] : memref<2x1xf32, #tpu.memory_space<vmem>>, vector<2x1xf32>
    %4 = vector.broadcast %3 : vector<2x1xf32> to vector<2x16xf32>
    %5 = arith.addf %2, %4 : vector<2x16xf32>
    %c0_5 = arith.constant 0 : index
    %c0_6 = arith.constant 0 : index
    %6 = vector.load %arg4[%c0_5, %c0_6] : memref<2x16xf32, #tpu.memory_space<vmem>>, vector<2x16xf32>
    tpu.vector_store %arg4[%c0_5, %c0_6], %5 {strides = array<i32>} : memref<2x16xf32, #tpu.memory_space<vmem>>, vector<2x16xf32>,
    return
  }
  func.func @transform_0(%arg0: i32) -> (i32, i32) {
    %c0_i32 = arith.constant 0 : i32
    %c0_i32_0 = arith.constant 0 : i32
    return %arg0, %c0_i32 : i32, i32
  }
  func.func @transform_1(%arg0: i32) -> (i32, i32) {
    %c0_i32 = arith.constant 0 : i32
    %c0_i32_0 = arith.constant 0 : i32
    %c0_i32_1 = arith.constant 0 : i32
    return %c0_i32, %c0_i32_0 : i32, i32
  }
  func.func @transform_2(%arg0: i32) -> (i32, i32) {
    %c0_i32 = arith.constant 0 : i32
    %c0_i32_0 = arith.constant 0 : i32
    %c0_i32_1 = arith.constant 0 : i32
    return %c0_i32, %c0_i32_0 : i32, i32
  }
  func.func @transform_3(%arg0: i32) -> (i32, i32) {
    %c0_i32 = arith.constant 0 : i32
    %c0_i32_0 = arith.constant 0 : i32
    return %c0_i32, %arg0 : i32, i32
  }
}

</mosaic_0001>

<llo_original>
// kernel: tpu_custom_call.1
$region0: #{tpu_custom_call.1}
  #allocation0 [shape = 'u32[]', space=smem, size = 0x4, offset = 0x4, fixed_abs, tag = 'smem constant byte address 0x4 - core index']
  #allocation1 [shape = 'u32[144,128]{1,0:T(1,128)}', space=vmem, size = 0x12000, scoped, tag = 'internal scratch']
  %s0 = inlined_call_operand.hbm [shape: f32[16,32], index: 0, kind: input, shape index: {}]
  %s1 = inlined_call_operand.vmem [shape: f32[2,32], index: 1, kind: input, shape index: {}]
  %s2 = inlined_call_operand.vmem [shape: f32[2,1], index: 2, kind: input, shape index: {}]
  %s3 = inlined_call_operand.hbm [shape: f32[2,16], index: 3, kind: output, shape index: {}]
  %s4 = sld [smem:[#allocation0]]
  $region26: #{tpu_custom_call.1} parent=0
    _
  %s6 = ssub.s32 1, %s4
  %s7 = scalar_select 0, %s6, %s4
  $region1: #{tpu_custom_call.1} parent=0
    #allocation2 [shape = 'u8[8192]{0}', space=vmem, size = 0x2000, scoped, tag = 'input window, operand 0, single buffered']
    #allocation3 [shape = 's32[1]{0}', space=sflag, size = 0x4, scoped, tag = 'scoped memory for tpu_custom_call.1']
    #allocation4 [shape = 's32[1]{0}', space=sflag, size = 0x4, scoped, tag = 'scoped memory for tpu_custom_call.1']
    #allocation5 [shape = 'u8[1024]{0}', space=vmem, size = 0x400, scoped, tag = 'output window, operand 0, single buffered']
    %8 = vsyncpa [#allocation3], 0
    %9 = vsyncpa [#allocation4], 0
    // Predicated region
    $region2: #{tpu_custom_call.1} parent=1 // pred_check
      _
    $region3: #{tpu_custom_call.1} parent=1 // pred_check_branch
      %11 = sbr.rel (0) target = $region5
    $region4: #{tpu_custom_call.1} parent=1 // pred_region
      %s13 = ssub.s32 256, 256
      %14 = vsyncadd [#allocation3], %s13
      %s15 = sshll.u32 [#allocation2], 4
      %s16 = int_to_ptr.vmem [resolvable:$true] %s15
      %21 = dma.hbm_to_vmem [thread:$0]  %s0, 256, %s16, [#allocation3], 128, 128, 8
    $region5: #{tpu_custom_call.1} parent=1 // pred_fallthru
      _
    // Predicated region
    $region6: #{tpu_custom_call.1} parent=1 // pred_check
      _
    $region7: #{tpu_custom_call.1} parent=1 // pred_check_branch
      %23 = sbr.rel (0) target = $region9
    $region8: #{tpu_custom_call.1} parent=1 // pred_region
      _
    $region9: #{tpu_custom_call.1} parent=1 // pred_fallthru
      _
    // Predicated region
    $region10: #{tpu_custom_call.1} parent=1 // pred_check
      _
    $region11: #{tpu_custom_call.1} parent=1 // pred_check_branch
      %25 = sbr.rel (0) target = $region13
    $region12: #{tpu_custom_call.1} parent=1 // pred_region
      _
    $region13: #{tpu_custom_call.1} parent=1 // pred_fallthru
      _
    // Predicated region
    $region14: #{tpu_custom_call.1} parent=1 // pred_check
      _
    $region15: #{tpu_custom_call.1} parent=1 // pred_check_branch
      %27 = sbr.rel (0) target = $region17
    $region16: #{tpu_custom_call.1} parent=1 // pred_region
      %28 = dma.done [#allocation3], 256
    $region17: #{tpu_custom_call.1} parent=1 // pred_fallthru
      _
    %v29 = vld [vmem:[%s1] sm:$0x3]
    %v30 = vld [vmem:[#allocation2] sm:$0xff]
    %v31 = vld [vmem:[#allocation2 + $0x8] sm:$0xff]
    %v32 = vld [vmem:[%s2] sm:$0x3]
    %34 = vset.pattern.permute.xlu0 0
    %35 = vperm.xlu0 %34, %v32
    %v36 = vpop.permute.xlu0 %35
    %vm38 = vcmask 261120
    %v40 = vsel %vm38, %v29, 0
    %v43 = vsel %vm38, %v30, 0
    %v46 = vsel %vm38, %v31, 0
    %48 = vmatprep.subr.mxu0 0.0
    %49 = vmatpush1.xpose.msra.mxu0 %v43
    %50 = vmatprep.subr.mxu0 0.0
    %51 = vmatpush1.xpose.msra.mxu0 %v46
    %52 = vmatprep.subr.mxu0 0.0
    %53 = vmatpush1.xpose.msra.mxu0 0.0
    %54 = vmatprep.subr.mxu0 0.0
    %55 = vmatpush1.xpose.msra.mxu0 0.0
    %56 = vmatprep.subr.mxu0 0.0
    %57 = vmatpush1.xpose.msra.mxu0 0.0
    %58 = vmatprep.subr.mxu0 0.0
    %59 = vmatpush1.xpose.msra.mxu0 0.0
    %60 = vmatprep.subr.mxu0 0.0
    %61 = vmatpush1.xpose.msra.mxu0 0.0
    %62 = vmatprep.subr.mxu0 0.0
    %63 = vmatpush1.xpose.msra.mxu0 0.0
    %64 = vmatprep.subr.mxu0 0.0
    %65 = vmatpush1.xpose.msra.mxu0 0.0
    %66 = vmatprep.subr.mxu0 0.0
    %67 = vmatpush1.xpose.msra.mxu0 0.0
    %68 = vmatprep.subr.mxu0 0.0
    %69 = vmatpush1.xpose.msra.mxu0 0.0
    %70 = vmatprep.subr.mxu0 0.0
    %71 = vmatpush1.xpose.msra.mxu0 0.0
    %72 = vmatprep.subr.mxu0 0.0
    %73 = vmatpush1.xpose.msra.mxu0 0.0
    %74 = vmatprep.subr.mxu0 0.0
    %75 = vmatpush1.xpose.msra.mxu0 0.0
    %76 = vmatprep.subr.mxu0 0.0
    %77 = vmatpush1.xpose.msra.mxu0 0.0
    %78 = vmatprep.subr.mxu0 0.0
    %79 = vmatpush1.xpose.msra.mxu0 0.0
    %80 = vmatprep.subr.mxu0 0.0
    %81 = vmatpush1.xpose.msra.mxu0 0.0
    %82 = vmatprep.subr.mxu0 0.0
    %83 = vmatpush1.xpose.msra.mxu0 0.0
    %84 = vmatprep.subr.mxu0 0.0
    %85 = vmatpush1.xpose.msra.mxu0 0.0
    %86 = vmatprep.subr.mxu0 0.0
    %87 = vmatpush1.xpose.msra.mxu0 0.0
    %88 = vmatprep.subr.mxu0 0.0
    %89 = vmatpush1.xpose.msra.mxu0 0.0
    %90 = vmatprep.subr.mxu0 0.0
    %91 = vmatpush1.xpose.msra.mxu0 0.0
    %92 = vmatprep.subr.mxu0 0.0
    %93 = vmatpush1.xpose.msra.mxu0 0.0
    %94 = vmatprep.subr.mxu0 0.0
    %95 = vmatpush1.xpose.msra.mxu0 0.0
    %96 = vmatprep.subr.mxu0 0.0
    %97 = vmatpush1.xpose.msra.mxu0 0.0
    %98 = vmatprep.subr.mxu0 0.0
    %99 = vmatpush1.xpose.msra.mxu0 0.0
    %100 = vmatprep.subr.mxu0 0.0
    %101 = vmatpush1.xpose.msra.mxu0 0.0
    %102 = vmatprep.subr.mxu0 0.0
    %103 = vmatpush1.xpose.msra.mxu0 0.0
    %104 = vmatprep.subr.mxu0 0.0
    %105 = vmatpush1.xpose.msra.mxu0 0.0
    %106 = vmatprep.subr.mxu0 0.0
    %107 = vmatpush1.xpose.msra.mxu0 0.0
    %108 = vmatprep.subr.mxu0 0.0
    %109 = vmatpush1.xpose.msra.mxu0 0.0
    %110 = vmatprep.subr.mxu0 0.0
    %111 = vmatpush1.xpose.msra.mxu0 0.0
    %112 = vmatprep.mubr.f32.mxu0 0.0
    %113 = vmatmul.mubr.f32.gmra.mrb[0].mxu0 %v40
    %v114 = vpop.f32.mrb[0].mxu0
    %v115 = vadd.f32 %v36, %v114
    %v116 = vpop.f32.mrb[0].mxu0
    %117 = vdwg.mxu0
    %vm118 = vcmask 123904
    %119 = vst.msk [vmem:[#allocation5] sm:$0x3] %vm118, %v115
    // Predicated region
    $region18: #{tpu_custom_call.1} parent=1 // pred_check
      _
    $region19: #{tpu_custom_call.1} parent=1 // pred_check_branch
      %121 = sbr.rel (0) target = $region21
    $region20: #{tpu_custom_call.1} parent=1 // pred_region
      %s123 = ssub.s32 32, 32
      %124 = vsyncadd [#allocation4], %s123
      %s126 = sshll.u32 [#allocation5], 4
      %s127 = int_to_ptr.vmem [resolvable:$true] %s126
      %129 = dma.vmem_to_hbm [thread:$0]  %s127, 32, %s3, [#allocation4]
    $region21: #{tpu_custom_call.1} parent=1 // pred_fallthru
      _
    // Predicated region
    $region22: #{tpu_custom_call.1} parent=1 // pred_check
      _
    $region23: #{tpu_custom_call.1} parent=1 // pred_check_branch
      %131 = sbr.rel (0) target = $region25
    $region24: #{tpu_custom_call.1} parent=1 // pred_region
      %132 = dma.done [#allocation4], 32
    $region25: #{tpu_custom_call.1} parent=1 // pred_fallthru
      _
    %133 = vsyncpa [#allocation3], 1
    %134 = vsyncpa [#allocation4], 1

</llo_original>
